<compile_context>
chip_gen: v7x
topology: tpu7x:2x2x1
jax: 0.10.0
libtpu: 0.0.40
codegen_flags: <defaults>
</compile_context>

<pallas_src>
import jax
import jax.numpy as jnp
from jax import lax
from jax.experimental import pallas as pl
from jax.experimental.pallas import tpu as pltpu

LANE = 128
SUBLANE = 8


def _ceil_to(x, m):
    return ((x + m - 1) // m) * m


# ---------------------------------------------------------------------------
# Kernel 1: filter_class batched row gather.
# Tables stay in HBM; the prefetched SMEM index vector drives G per-row DMAs
# per grid step directly into the (G, c) VMEM output blocks.
# ---------------------------------------------------------------------------
def _make_gather_kernel(g, m):
    def kernel(idx_ref, seg_hbm, clust_hbm, seg_out, clust_out, sem):
        step = pl.program_id(0)
        base = step * g
        n_valid = jnp.minimum(g, m - base)   # ragged tail of the last block

        def issue(j, carry):
            row = idx_ref[base + j]
            pltpu.make_async_copy(seg_hbm.at[row], seg_out.at[j], sem.at[0]).start()
            pltpu.make_async_copy(clust_hbm.at[row], clust_out.at[j], sem.at[1]).start()
            return carry
        lax.fori_loop(0, n_valid, issue, 0)

        # Drain: same number/size of waits as starts on each shared semaphore,
        # so the last wait only completes once every row DMA has landed.
        def drain(j, carry):
            pltpu.make_async_copy(seg_hbm.at[0], seg_out.at[j], sem.at[0]).wait()
            pltpu.make_async_copy(clust_hbm.at[0], clust_out.at[j], sem.at[1]).wait()
            return carry
        lax.fori_loop(0, n_valid, drain, 0)
    return kernel


def filter_class(seg_label, clust_label, filter_index, gather_block=128):
    """(N, Cs)/(N, Cc) -> (M, Cs)/(M, Cc) restricted to filter_index rows."""
    c_seg = seg_label.shape[1]
    c_clust = clust_label.shape[1]
    m = int(filter_index.shape[0])
    if m == 0:
        return (jnp.zeros((0, c_seg), seg_label.dtype),
                jnp.zeros((0, c_clust), clust_label.dtype))

    g = min(gather_block, m)
    if g < m:
        g = max(SUBLANE, (g // SUBLANE) * SUBLANE)   # sublane-aligned block rows
    grid = (pl.cdiv(m, g),)

    grid_spec = pltpu.PrefetchScalarGridSpec(
        num_scalar_prefetch=1,
        grid=grid,
        in_specs=[
            pl.BlockSpec(memory_space=pl.ANY),   # seg_label stays in HBM
            pl.BlockSpec(memory_space=pl.ANY),   # clust_label stays in HBM
        ],
        out_specs=[
            pl.BlockSpec((g, c_seg), lambda i, idx: (i, 0)),
            pl.BlockSpec((g, c_clust), lambda i, idx: (i, 0)),
        ],
        scratch_shapes=[pltpu.SemaphoreType.DMA((2,))],
    )

    seg_f, clust_f = pl.pallas_call(
        _make_gather_kernel(g, m),
        out_shape=(
            jax.ShapeDtypeStruct((m, c_seg), seg_label.dtype),
            jax.ShapeDtypeStruct((m, c_clust), clust_label.dtype),
        ),
        grid_spec=grid_spec,
        compiler_params=pltpu.CompilerParams(
            dimension_semantics=("parallel",)),   # rows independent -> v7x 2-TC
    )(filter_index.astype(jnp.int32), seg_label, clust_label)
    return seg_f, clust_f


# ---------------------------------------------------------------------------
# Kernel 2: edge BCE-with-logits loss + accuracy.
# f32 logit stream + int8 label stream; validity mask from the static edge
# count; tiny (1,128) accumulators; grid = (core_split, steps) with the core
# axis "parallel" (per-core partial sums combined on the host).
# ---------------------------------------------------------------------------
def _make_edge_bce_kernel(block_rows, num_edges, n_steps):
    def kernel(logit_ref, label_ref, out_ref, bce_acc, cor_acc):
        c = pl.program_id(0)
        k = pl.program_id(1)

        @pl.when(k == 0)
        def _():
            bce_acc[...] = jnp.zeros_like(bce_acc)
            cor_acc[...] = jnp.zeros_like(cor_acc)

        x = logit_ref[...]                          # (block_rows, 128) f32
        y = label_ref[...].astype(jnp.float32)      # (block_rows, 128) {0,1}

        # Validity mask from the global flat element index (num_edges static).
        blk = c * n_steps + k
        row_ids = lax.broadcasted_iota(jnp.int32, (block_rows, LANE), 0)
        lane_ids = lax.broadcasted_iota(jnp.int32, (block_rows, LANE), 1)
        flat = (blk * block_rows + row_ids) * LANE + lane_ids
        mask = (flat < num_edges).astype(jnp.float32)

        # Stable BCE with logits: max(x,0) - x*y + log1p(exp(-|x|)).
        bce = (jnp.maximum(x, 0.0) - x * y
               + jnp.log1p(jnp.exp(-jnp.abs(x)))) * mask
        pred = (x > 0.0).astype(jnp.float32)
        correct = (pred == y).astype(jnp.float32) * mask

        # Per-step sublane reduce into small (1,128) accumulators: no full-tile
        # scratch load/store traffic, frees VMEM for bigger input blocks.
        bce_acc[...] += jnp.sum(bce, axis=0, keepdims=True)
        cor_acc[...] += jnp.sum(correct, axis=0, keepdims=True)

        @pl.when(k == n_steps - 1)
        def _():
            out_ref[...] = jnp.zeros_like(out_ref)
            out_ref[0:1, :] = bce_acc[...]
            out_ref[1:2, :] = cor_acc[...]

    return kernel


def edge_loss(logits2, labels2, num_edges, n_split, n_steps, block_rows):
    sums = pl.pallas_call(
        _make_edge_bce_kernel(block_rows, num_edges, n_steps),
        out_shape=jax.ShapeDtypeStruct((n_split * SUBLANE, LANE), jnp.float32),
        grid=(n_split, n_steps),
        in_specs=[
            pl.BlockSpec((block_rows, LANE), lambda c, k: (c * n_steps + k, 0)),
            pl.BlockSpec((block_rows, LANE), lambda c, k: (c * n_steps + k, 0)),
        ],
        out_specs=pl.BlockSpec((SUBLANE, LANE), lambda c, k: (c, 0)),
        scratch_shapes=[
            pltpu.VMEM((1, LANE), jnp.float32),
            pltpu.VMEM((1, LANE), jnp.float32),
        ],
        compiler_params=pltpu.CompilerParams(
            dimension_semantics=("parallel", "arbitrary")),
    )(logits2, labels2)

    per_core = sums.reshape(n_split, SUBLANE, LANE)
    totals = jnp.sum(per_core, axis=(0, 2))   # combine cores + lanes
    denom = float(max(num_edges, 1))          # static valid-edge count
    return totals[0] / denom, totals[1] / denom


# ---------------------------------------------------------------------------
# Module wrapper mirroring GraphSPICELoss.forward
# ---------------------------------------------------------------------------
class GraphSPICELossPallas:
    def __init__(self, graph_spice=None, graph_spice_loss=None):
        graph_spice = graph_spice or {}
        graph_spice_loss = graph_spice_loss or {}
        self.evaluate_clustering_metrics = graph_spice_loss.get(
            "evaluate_clustering_metrics", False)
        self.invert = graph_spice.get("invert", True)
        self.cluster_col = graph_spice.get("cluster_col", 4)
        self.max_block_rows = int(graph_spice_loss.get("max_block_rows", 2048))
        self.n_core_splits = 2   # leading "parallel" axis: 2x on v7x, no-op elsewhere
        # TODO(synk): loss_factory is a config-driven dispatch; we implement the
        # canonical Graph-SPICE BCE edge loss (loss + edge-assignment accuracy).
        # TODO(synk): ClusterGraphConstructor.fit_predict / clustering metrics
        # (graph connected components, ARI/purity) have no clean Pallas equivalent.

    def __call__(self, seg_label, clust_label, filter_index, edge_index, edge_score):
        # 1) filter_class (batched manual-DMA gather kernel, native dtype).
        seg_f, clust_f = filter_class(seg_label, clust_label, filter_index)

        # 2) derive edge truth from filtered cluster ids.
        #    NOTE: float-held integer cluster ids are exact below 2^24.
        # TODO(synk): fuse the label gather into the BCE kernel (SMEM edge_index
        # + VMEM-resident cid) to drop the label HBM stream entirely.
        cid = clust_f[:, self.cluster_col]

        e = int(edge_score.shape[0])
        n_split = self.n_core_splits
        rows_needed = pl.cdiv(max(e, 1), LANE)
        # int8 labels pack 4/word along sublanes -> keep block rows a multiple of 32.
        block_rows = min(self.max_block_rows,
                         _ceil_to(pl.cdiv(rows_needed, n_split), 32))
        n_steps = pl.cdiv(rows_needed, n_split * block_rows)
        rows_pad = n_split * n_steps * block_rows
        e_pad = rows_pad * LANE

        # Labels produced directly in padded (rows, 128) int8 layout: pad the
        # small index arrays, not the big streams.
        src = jnp.pad(edge_index[0].astype(jnp.int32), (0, e_pad - e))
        dst = jnp.pad(edge_index[1].astype(jnp.int32), (0, e_pad - e))
        same = (jnp.take(cid, src) == jnp.take(cid, dst)).astype(jnp.int8)
        label = (1 - same) if self.invert else same
        labels2 = label.reshape(rows_pad, LANE)

        # Logits stay f32 so the reported loss is exact (bf16 would shave
        # another 2 B/edge at ~1e-3 relative perturbation).
        # TODO(synk): accept edge_score pre-laid-out as (rows, 128) upstream to
        # drop this pad+reshape copy of the logit stream.
        logits2 = jnp.pad(edge_score.astype(jnp.float32),
                          (0, e_pad - e)).reshape(rows_pad, LANE)

        # 3) edge loss (Pallas 2-core-split reduction kernel).
        loss, accuracy = edge_loss(logits2, labels2, e, n_split, n_steps,
                                   block_rows)

        return {
            "loss": loss,
            "accuracy": accuracy,
            "seg_label": seg_f,
            "clust_label": clust_f,
        }


if __name__ == "__main__":
    key = jax.random.PRNGKey(0)
    N, D, M, E = 64, 3, 48, 96
    k1, k2, k3, k4, k5, k6, k7 = jax.random.split(key, 7)

    coords = jax.random.uniform(k1, (N, D), jnp.float32) * 16.0
    batch_ids = jnp.zeros((N, 1), jnp.float32)
    seg = jax.random.randint(k2, (N, 1), 0, 4).astype(jnp.float32)
    seg_label = jnp.concatenate([batch_ids, coords, seg], axis=1)          # (N, 1+D+1)

    cid = jax.random.randint(k3, (N, 1), 0, 6).astype(jnp.float32)
    gid = jax.random.randint(k4, (N, 1), 0, 4).astype(jnp.float32)
    clust_label = jnp.concatenate([batch_ids, coords, cid, gid], axis=1)   # (N, 1+D+2)

    filter_index = jnp.sort(jax.random.permutation(k5, N)[:M]).astype(jnp.int32)  # (M,)
    edge_index = jax.random.randint(k6, (2, E), 0, M, dtype=jnp.int32)             # (2, E)
    edge_score = jax.random.normal(k7, (E,), jnp.float32)                          # (E,)

    model = GraphSPICELossPallas(
        graph_spice={"invert": True, "cluster_col": 4},
        graph_spice_loss={"evaluate_clustering_metrics": False},
    )
    out = model(seg_label, clust_label, filter_index, edge_index, edge_score)
    jax.block_until_ready(out)
    print("KERNEL_OK")
</pallas_src>

<mosaic_0001>
module attributes {stable_mosaic.version = 11 : i64} {
  func.func @kernel(%arg0: i32, %arg1: memref<48xi32, #tpu.memory_space<smem>>, %arg2: memref<64x5xf32, #tpu.memory_space<any>>, %arg3: memref<64x6xf32, #tpu.memory_space<any>>, %arg4: memref<48x5xf32, #tpu.memory_space<vmem>>, %arg5: memref<48x6xf32, #tpu.memory_space<vmem>>, %arg6: memref<2x!tpu.dma_semaphore, #tpu.memory_space<semaphore_mem>>) attributes {dimension_semantics = [#tpu.dimension_semantics<parallel>], iteration_bounds = array<i64: 1>, scalar_prefetch = 1 : i64, scratch_operands = 1 : i64, tpu.core_type = #tpu.core_type<tc>, window_params = [{}, {}, {transform_indices = @transform_2, window_bounds = array<i64: 48, 5>}, {transform_indices = @transform_3, window_bounds = array<i64: 48, 6>}]} {
    %c48_i32 = arith.constant 48 : i32
    %0 = arith.muli %arg0, %c48_i32 : i32
    %c48_i32_0 = arith.constant 48 : i32
    %1 = arith.subi %c48_i32_0, %0 : i32
    %c48_i32_1 = arith.constant 48 : i32
    %2 = arith.minsi %c48_i32_1, %1 : i32
    %c0_i32 = arith.constant 0 : i32
    %c0_i32_2 = arith.constant 0 : i32
    %3 = arith.subi %2, %c0_i32_2 : i32
    %4 = arith.addi %c0_i32_2, %3 : i32
    %c1_i32 = arith.constant 1 : i32
    scf.for %arg7 = %c0_i32_2 to %4 step %c1_i32  : i32 {
      %7 = arith.addi %0, %arg7 : i32
      %8 = arith.index_cast %7 : i32 to index
      %9 = memref.load %arg1[%8] : memref<48xi32, #tpu.memory_space<smem>>
      %c0_i32_6 = arith.constant 0 : i32
      %c0_i32_7 = arith.constant 0 : i32
      %10 = tpu.memref_slice %arg2[%9, %c0_i32_7] : memref<64x5xf32, #tpu.memory_space<any>> -> memref<1x5xf32, #tpu.memory_space<any>>
      %11 = tpu.memref_squeeze %10 : memref<1x5xf32, #tpu.memory_space<any>> -> memref<5xf32, #tpu.memory_space<any>>
      %c0_i32_8 = arith.constant 0 : i32
      %12 = tpu.memref_slice %arg4[%arg7, %c0_i32_8] : memref<48x5xf32, #tpu.memory_space<vmem>> -> memref<1x5xf32, #tpu.memory_space<vmem>>
      %13 = tpu.memref_squeeze %12 : memref<1x5xf32, #tpu.memory_space<vmem>> -> memref<5xf32, #tpu.memory_space<vmem>>
      %14 = tpu.memref_slice %arg6[%c0_i32_6] : memref<2x!tpu.dma_semaphore, #tpu.memory_space<semaphore_mem>> -> memref<1x!tpu.dma_semaphore, #tpu.memory_space<semaphore_mem>>
      %15 = tpu.memref_squeeze %14 : memref<1x!tpu.dma_semaphore, #tpu.memory_space<semaphore_mem>> -> memref<!tpu.dma_semaphore, #tpu.memory_space<semaphore_mem>>
      tpu.enqueue_dma source(%11 : memref<5xf32, #tpu.memory_space<any>>) target(%13 : memref<5xf32, #tpu.memory_space<vmem>>) target_semaphore(%15 : memref<!tpu.dma_semaphore, #tpu.memory_space<semaphore_mem>>)
      %c1_i32_9 = arith.constant 1 : i32
      %c0_i32_10 = arith.constant 0 : i32
      %16 = tpu.memref_slice %arg3[%9, %c0_i32_10] : memref<64x6xf32, #tpu.memory_space<any>> -> memref<1x6xf32, #tpu.memory_space<any>>
      %17 = tpu.memref_squeeze %16 : memref<1x6xf32, #tpu.memory_space<any>> -> memref<6xf32, #tpu.memory_space<any>>
      %c0_i32_11 = arith.constant 0 : i32
      %18 = tpu.memref_slice %arg5[%arg7, %c0_i32_11] : memref<48x6xf32, #tpu.memory_space<vmem>> -> memref<1x6xf32, #tpu.memory_space<vmem>>
      %19 = tpu.memref_squeeze %18 : memref<1x6xf32, #tpu.memory_space<vmem>> -> memref<6xf32, #tpu.memory_space<vmem>>
      %20 = tpu.memref_slice %arg6[%c1_i32_9] : memref<2x!tpu.dma_semaphore, #tpu.memory_space<semaphore_mem>> -> memref<1x!tpu.dma_semaphore, #tpu.memory_space<semaphore_mem>>
      %21 = tpu.memref_squeeze %20 : memref<1x!tpu.dma_semaphore, #tpu.memory_space<semaphore_mem>> -> memref<!tpu.dma_semaphore, #tpu.memory_space<semaphore_mem>>
      tpu.enqueue_dma source(%17 : memref<6xf32, #tpu.memory_space<any>>) target(%19 : memref<6xf32, #tpu.memory_space<vmem>>) target_semaphore(%21 : memref<!tpu.dma_semaphore, #tpu.memory_space<semaphore_mem>>)
    }
    %c0_i32_3 = arith.constant 0 : i32
    %c0_i32_4 = arith.constant 0 : i32
    %5 = arith.subi %2, %c0_i32_4 : i32
    %6 = arith.addi %c0_i32_4, %5 : i32
    %c1_i32_5 = arith.constant 1 : i32
    scf.for %arg7 = %c0_i32_4 to %6 step %c1_i32_5  : i32 {
      %c0_i32_6 = arith.constant 0 : i32
      %c0_i32_7 = arith.constant 0 : i32
      %c0_i32_8 = arith.constant 0 : i32
      %7 = tpu.memref_slice %arg2[%c0_i32_6, %c0_i32_8] : memref<64x5xf32, #tpu.memory_space<any>> -> memref<1x5xf32, #tpu.memory_space<any>>
      %8 = tpu.memref_squeeze %7 : memref<1x5xf32, #tpu.memory_space<any>> -> memref<5xf32, #tpu.memory_space<any>>
      %c0_i32_9 = arith.constant 0 : i32
      %9 = tpu.memref_slice %arg4[%arg7, %c0_i32_9] : memref<48x5xf32, #tpu.memory_space<vmem>> -> memref<1x5xf32, #tpu.memory_space<vmem>>
      %10 = tpu.memref_squeeze %9 : memref<1x5xf32, #tpu.memory_space<vmem>> -> memref<5xf32, #tpu.memory_space<vmem>>
      %11 = tpu.memref_slice %arg6[%c0_i32_7] : memref<2x!tpu.dma_semaphore, #tpu.memory_space<semaphore_mem>> -> memref<1x!tpu.dma_semaphore, #tpu.memory_space<semaphore_mem>>
      %12 = tpu.memref_squeeze %11 : memref<1x!tpu.dma_semaphore, #tpu.memory_space<semaphore_mem>> -> memref<!tpu.dma_semaphore, #tpu.memory_space<semaphore_mem>>
      tpu.wait_dma2 semaphore(%12 : memref<!tpu.dma_semaphore, #tpu.memory_space<semaphore_mem>>) src(%8 : memref<5xf32, #tpu.memory_space<any>>) dst(%10 : memref<5xf32, #tpu.memory_space<vmem>>)
      %c0_i32_10 = arith.constant 0 : i32
      %c1_i32_11 = arith.constant 1 : i32
      %c0_i32_12 = arith.constant 0 : i32
      %13 = tpu.memref_slice %arg3[%c0_i32_10, %c0_i32_12] : memref<64x6xf32, #tpu.memory_space<any>> -> memref<1x6xf32, #tpu.memory_space<any>>
      %14 = tpu.memref_squeeze %13 : memref<1x6xf32, #tpu.memory_space<any>> -> memref<6xf32, #tpu.memory_space<any>>
      %c0_i32_13 = arith.constant 0 : i32
      %15 = tpu.memref_slice %arg5[%arg7, %c0_i32_13] : memref<48x6xf32, #tpu.memory_space<vmem>> -> memref<1x6xf32, #tpu.memory_space<vmem>>
      %16 = tpu.memref_squeeze %15 : memref<1x6xf32, #tpu.memory_space<vmem>> -> memref<6xf32, #tpu.memory_space<vmem>>
      %17 = tpu.memref_slice %arg6[%c1_i32_11] : memref<2x!tpu.dma_semaphore, #tpu.memory_space<semaphore_mem>> -> memref<1x!tpu.dma_semaphore, #tpu.memory_space<semaphore_mem>>
      %18 = tpu.memref_squeeze %17 : memref<1x!tpu.dma_semaphore, #tpu.memory_space<semaphore_mem>> -> memref<!tpu.dma_semaphore, #tpu.memory_space<semaphore_mem>>
      tpu.wait_dma2 semaphore(%18 : memref<!tpu.dma_semaphore, #tpu.memory_space<semaphore_mem>>) src(%14 : memref<6xf32, #tpu.memory_space<any>>) dst(%16 : memref<6xf32, #tpu.memory_space<vmem>>)
    }
    return
  }
  func.func @transform_2(%arg0: i32, %arg1: memref<48xi32, #tpu.memory_space<smem>>) -> (i32, i32) {
    %c0_i32 = arith.constant 0 : i32
    %c0_i32_0 = arith.constant 0 : i32
    return %arg0, %c0_i32 : i32, i32
  }
  func.func @transform_3(%arg0: i32, %arg1: memref<48xi32, #tpu.memory_space<smem>>) -> (i32, i32) {
    %c0_i32 = arith.constant 0 : i32
    %c0_i32_0 = arith.constant 0 : i32
    return %arg0, %c0_i32 : i32, i32
  }
}

</mosaic_0001>

<llo_original>
// kernel: tpu_custom_call.1
$region0: #{tpu_custom_call.1}
  #allocation0 [shape = 'u32[]', space=smem, size = 0x4, offset = 0x4, fixed_abs, tag = 'smem constant byte address 0x4 - core index']
  #allocation1 [shape = 'u32[144,128]{1,0:T(1,128)}', space=vmem, size = 0x12000, scoped, tag = 'internal scratch']
  #allocation2 [shape = 's32[2]{0}', space=sflag, size = 0x8, scoped, tag = 'scratch operand']
  #allocation3 [shape = 's32[1]{0}', space=sflag, size = 0x4, scoped, tag = 'scoped memory for tpu_custom_call.1']
  #allocation4 [shape = 'u8[512]{0}', space=smem, size = 0x200, scoped, tag = 'prefetched SMEM operand 0']
  #allocation5 [shape = 's32[]', space=sflag, size = 0x4, offset = 0, fixed_abs, tag = 'sflag constant byte address 0x0 - dummy sync flag']
  #allocation6 [shape = 's32[]', space=sflag, size = 0x4, offset = 0, fixed_abs, tag = 'sflag constant byte address 0x0 - dummy sync flag']
  %s0 = inlined_call_operand.vmem [shape: s32[48], index: 0, kind: input, shape index: {}]
  %s1 = inlined_call_operand.vmem [shape: f32[64,5], index: 1, kind: input, shape index: {}]
  %s2 = inlined_call_operand.vmem [shape: f32[64,6], index: 2, kind: input, shape index: {}]
  %s3 = inlined_call_operand.vmem [shape: f32[48,5], index: 3, kind: output, shape index: {0}]
  %s4 = inlined_call_operand.vmem [shape: f32[48,6], index: 4, kind: output, shape index: {1}]
  %5 = xla_tuple %s3, %s4
  %s6 = sld [smem:[#allocation0]]
  $region92: #{tpu_custom_call.1} parent=0
    _
  %s8 = ssub.s32 1, %s6
  %s9 = scalar_select 0, %s8, %s6
  %s10 = sshll.u32 %s0, 4
  %s11 = int_to_ptr.vmem [resolvable:$true] %s10
  %13 = dma.vmem_to_smem %s11, 16, [#allocation4], [#allocation3]
  %14 = dma.done [#allocation3], 16
  %15 = sfence
  %s16 = smul.u32 0, 48
  %s17 = ssub.s32 48, %s16
  %p18 = scmp.lt.s32.totalorder %s17, 48
  %s19 = scalar_select %p18, %s17, 48
  // While loop
  $region2: #{tpu_custom_call.1} parent=0 // loop_pre_header
    _
  $region3: #{tpu_custom_call.1} parent=0 // loop_header
    %s21 = sphi 0, %s23
    %p22 = scmp.ge.s32.totalorder %s21, %s19
  $region4: #{tpu_custom_call.1} parent=0 // loop_header_branch
    %25 = sbr.rel (%p22) target = $region8
  $region5: #{tpu_custom_call.1} parent=0 // loop_body
    %s26 = sadd.s32 %s16, %s21
    %s27 = sld [smem:[#allocation4 + %s26]]
    %s28 = scalar_lea.vmem %s1, %s27
    %s29 = scalar_lea.vmem %s3, %s21
    %p31 = scmp.lt.u32.totalorder 1, 8
    %p32 = pneg %p31
    // Predicated region
    $region9: #{tpu_custom_call.1} parent=5 // pred_check
      _
    $region10: #{tpu_custom_call.1} parent=5 // pred_check_branch
      %34 = sbr.rel (%p31) target = $region12
    $region11: #{tpu_custom_call.1} parent=5 // pred_region
      %s49 = sand.u32 1, 7
      %p50 = scmp.eq.s32.totalorder %s49, 0
      %p51 = pneg %p50
      // Predicated region
      $region24: #{tpu_custom_call.1} parent=11 // pred_check
        _
      $region25: #{tpu_custom_call.1} parent=11 // pred_check_branch
        %53 = sbr.rel (%p50) target = $region27
      $region26: #{tpu_custom_call.1} parent=11 // pred_region
        %s54 = sand.u32 1, 7
        %s55 = ssub.s32 1, %s54
        %s56 = scalar_lea.vmem %s28, %s55
        %s57 = ssub.s32 1, %s54
        %s58 = scalar_lea.vmem %s29, %s57
        %s59 = sshllo.u32 0, %s54
        loop: start=0, step=1, limit=1
        $region28: #{tpu_custom_call.1} parent=26 // loop_pre_header
          _
        $region29: #{tpu_custom_call.1} parent=26 // loop_header
          %s61 = sphi 0, %s65
          %p62 = scmp.ge.s32.totalorder %s61, 1
          %s66 = sphi %s56, %s56
          %s67 = sphi %s58, %s58
        $region30: #{tpu_custom_call.1} parent=26 // loop_header_branch
          %64 = sbr.rel (%p62) target = $region34
        $region31: #{tpu_custom_call.1} parent=26 // loop_body
          %v68 = vld [vmem:[%s66] sm:%s59]
          %69 = vst [vmem:[%s67] sm:%s59] %v68
        $region32: #{tpu_custom_call.1} parent=26 // loop_footer
          %s65 = sadd.s32 1, %s61
        $region33: #{tpu_custom_call.1} parent=26 // loop_footer_branch
          %60 = sbr.rel target = $region29
        $region34: #{tpu_custom_call.1} parent=26 // loop_exit
          _
      $region27: #{tpu_custom_call.1} parent=11 // pred_fallthru
        _
    $region12: #{tpu_custom_call.1} parent=5 // pred_fallthru
      _
    // Predicated region
    $region13: #{tpu_custom_call.1} parent=5 // pred_check
      %p35 = pneg %p31
    $region14: #{tpu_custom_call.1} parent=5 // pred_check_branch
      %37 = sbr.rel (%p35) target = $region16
    $region15: #{tpu_custom_call.1} parent=5 // pred_region
      %s38 = sshllo.u32 0, 1
      loop: start=0, step=1, limit=1
      $region17: #{tpu_custom_call.1} parent=15 // loop_pre_header
        _
      $region18: #{tpu_custom_call.1} parent=15 // loop_header
        %s40 = sphi 0, %s44
        %p41 = scmp.ge.s32.totalorder %s40, 1
        %s45 = sphi %s28, %s28
        %s46 = sphi %s29, %s29
      $region19: #{tpu_custom_call.1} parent=15 // loop_header_branch
        %43 = sbr.rel (%p41) target = $region23
      $region20: #{tpu_custom_call.1} parent=15 // loop_body
        %v47 = vld [vmem:[%s45] sm:%s38]
        %48 = vst [vmem:[%s46] sm:%s38] %v47
      $region21: #{tpu_custom_call.1} parent=15 // loop_footer
        %s44 = sadd.s32 1, %s40
      $region22: #{tpu_custom_call.1} parent=15 // loop_footer_branch
        %39 = sbr.rel target = $region18
      $region23: #{tpu_custom_call.1} parent=15 // loop_exit
        _
    $region16: #{tpu_custom_call.1} parent=5 // pred_fallthru
      _
    // Predicated region
    $region35: #{tpu_custom_call.1} parent=5 // pred_check
      _
    $region36: #{tpu_custom_call.1} parent=5 // pred_check_branch
      %72 = sbr.rel (0) target = $region38
    $region37: #{tpu_custom_call.1} parent=5 // pred_region
      %73 = vsyncadd [#allocation2], 16
    $region38: #{tpu_custom_call.1} parent=5 // pred_fallthru
      _
    %s74 = scalar_lea.vmem %s2, %s27
    %s75 = scalar_lea.vmem %s4, %s21
    %s76 = scalar_lea.sflag [#allocation2], 1
    %p78 = scmp.lt.u32.totalorder 1, 8
    %p79 = pneg %p78
    // Predicated region
    $region39: #{tpu_custom_call.1} parent=5 // pred_check
      _
    $region40: #{tpu_custom_call.1} parent=5 // pred_check_branch
      %81 = sbr.rel (%p78) target = $region42
    $region41: #{tpu_custom_call.1} parent=5 // pred_region
      %s96 = sand.u32 1, 7
      %p97 = scmp.eq.s32.totalorder %s96, 0
      %p98 = pneg %p97
      // Predicated region
      $region54: #{tpu_custom_call.1} parent=41 // pred_check
        _
      $region55: #{tpu_custom_call.1} parent=41 // pred_check_branch
        %100 = sbr.rel (%p97) target = $region57
      $region56: #{tpu_custom_call.1} parent=41 // pred_region
        %s101 = sand.u32 1, 7
        %s102 = ssub.s32 1, %s101
        %s103 = scalar_lea.vmem %s74, %s102
        %s104 = ssub.s32 1, %s101
        %s105 = scalar_lea.vmem %s75, %s104
        %s106 = sshllo.u32 0, %s101
        loop: start=0, step=1, limit=1
        $region58: #{tpu_custom_call.1} parent=56 // loop_pre_header
          _
        $region59: #{tpu_custom_call.1} parent=56 // loop_header
          %s108 = sphi 0, %s112
          %p109 = scmp.ge.s32.totalorder %s108, 1
          %s113 = sphi %s103, %s103
          %s114 = sphi %s105, %s105
        $region60: #{tpu_custom_call.1} parent=56 // loop_header_branch
          %111 = sbr.rel (%p109) target = $region64
        $region61: #{tpu_custom_call.1} parent=56 // loop_body
          %v115 = vld [vmem:[%s113] sm:%s106]
          %116 = vst [vmem:[%s114] sm:%s106] %v115
        $region62: #{tpu_custom_call.1} parent=56 // loop_footer
          %s112 = sadd.s32 1, %s108
        $region63: #{tpu_custom_call.1} parent=56 // loop_footer_branch
          %107 = sbr.rel target = $region59
        $region64: #{tpu_custom_call.1} parent=56 // loop_exit
          _
      $region57: #{tpu_custom_call.1} parent=41 // pred_fallthru
        _
    $region42: #{tpu_custom_call.1} parent=5 // pred_fallthru
      _
    // Predicated region
    $region43: #{tpu_custom_call.1} parent=5 // pred_check
      %p82 = pneg %p78
    $region44: #{tpu_custom_call.1} parent=5 // pred_check_branch
      %84 = sbr.rel (%p82) target = $region46
    $region45: #{tpu_custom_call.1} parent=5 // pred_region
      %s85 = sshllo.u32 0, 1
      loop: start=0, step=1, limit=1
      $region47: #{tpu_custom_call.1} parent=45 // loop_pre_header
        _
      $region48: #{tpu_custom_call.1} parent=45 // loop_header
        %s87 = sphi 0, %s91
        %p88 = scmp.ge.s32.totalorder %s87, 1
        %s92 = sphi %s74, %s74
        %s93 = sphi %s75, %s75
      $region49: #{tpu_custom_call.1} parent=45 // loop_header_branch
        %90 = sbr.rel (%p88) target = $region53
      $region50: #{tpu_custom_call.1} parent=45 // loop_body
        %v94 = vld [vmem:[%s92] sm:%s85]
        %95 = vst [vmem:[%s93] sm:%s85] %v94
      $region51: #{tpu_custom_call.1} parent=45 // loop_footer
        %s91 = sadd.s32 1, %s87
      $region52: #{tpu_custom_call.1} parent=45 // loop_footer_branch
        %86 = sbr.rel target = $region48
      $region53: #{tpu_custom_call.1} parent=45 // loop_exit
        _
    $region46: #{tpu_custom_call.1} parent=5 // pred_fallthru
      _
    // Predicated region
    $region65: #{tpu_custom_call.1} parent=5 // pred_check
      _
    $region66: #{tpu_custom_call.1} parent=5 // pred_check_branch
      %119 = sbr.rel (0) target = $region68
    $region67: #{tpu_custom_call.1} parent=5 // pred_region
      %120 = vsyncadd %s76, 16
    $region68: #{tpu_custom_call.1} parent=5 // pred_fallthru
      _
  $region6: #{tpu_custom_call.1} parent=0 // loop_footer
    %s23 = sadd.s32 %s21, 1
  $region7: #{tpu_custom_call.1} parent=0 // loop_footer_branch
    %20 = sbr.rel target = $region3
  $region8: #{tpu_custom_call.1} parent=0 // loop_exit
    _
  // While loop
  $region69: #{tpu_custom_call.1} parent=0 // loop_pre_header
    _
  $region70: #{tpu_custom_call.1} parent=0 // loop_header
    %s122 = sphi 0, %s124
    %p123 = scmp.ge.s32.totalorder %s122, %s19
  $region71: #{tpu_custom_call.1} parent=0 // loop_header_branch
    %126 = sbr.rel (%p123) target = $region75
  $region72: #{tpu_custom_call.1} parent=0 // loop_body
    %128 = dma.done [#allocation2], 16
    %s129 = scalar_lea.sflag [#allocation2], 1
    %131 = dma.done %s129, 16
  $region73: #{tpu_custom_call.1} parent=0 // loop_footer
    %s124 = sadd.s32 %s122, 1
  $region74: #{tpu_custom_call.1} parent=0 // loop_footer_branch
    %121 = sbr.rel target = $region70
  $region75: #{tpu_custom_call.1} parent=0 // loop_exit
    _
  // Predicated region
  $region76: #{tpu_custom_call.1} parent=0 // pred_check
    _
  $region77: #{tpu_custom_call.1} parent=0 // pred_check_branch
    %133 = sbr.rel (0) target = $region79
  $region78: #{tpu_custom_call.1} parent=0 // pred_region
    _
  $region79: #{tpu_custom_call.1} parent=0 // pred_fallthru
    _
  // Predicated region
  $region80: #{tpu_custom_call.1} parent=0 // pred_check
    _
  $region81: #{tpu_custom_call.1} parent=0 // pred_check_branch
    %135 = sbr.rel (0) target = $region83
  $region82: #{tpu_custom_call.1} parent=0 // pred_region
    _
  $region83: #{tpu_custom_call.1} parent=0 // pred_fallthru
    _
  // Predicated region
  $region84: #{tpu_custom_call.1} parent=0 // pred_check
    _
  $region85: #{tpu_custom_call.1} parent=0 // pred_check_branch
    %137 = sbr.rel (0) target = $region87
  $region86: #{tpu_custom_call.1} parent=0 // pred_region
    _
  $region87: #{tpu_custom_call.1} parent=0 // pred_fallthru
    _
  // Predicated region
  $region88: #{tpu_custom_call.1} parent=0 // pred_check
    _
  $region89: #{tpu_custom_call.1} parent=0 // pred_check_branch
    %139 = sbr.rel (0) target = $region91
  $region90: #{tpu_custom_call.1} parent=0 // pred_region
    _
  $region91: #{tpu_custom_call.1} parent=0 // pred_fallthru
    _
  %140 = vsyncmov [#allocation2]
  %s141 = vpop.sfrf %140
  %p142 = scmp.eq.s32.totalorder %s141, 0
  %p143 = pneg %p142
  %145 = shalt.err (%p143)
  %s146 = scalar_lea.sflag [#allocation2], 1
  %147 = vsyncmov %s146
  %s148 = vpop.sfrf %147
  %p149 = scmp.eq.s32.totalorder %s148, 0
  %p150 = pneg %p149
  %152 = shalt.err (%p150)

</llo_original>
